<compile_context>
chip_gen: v5e
topology: v5e:2x2
jax: 0.10.0
libtpu: 0.0.40
codegen_flags: <defaults>
</compile_context>

<pallas_src>
import jax
import jax.numpy as jnp
import numpy as np
from jax.experimental import pallas as pl
from jax.experimental.pallas import tpu as pltpu


def _round_up(x, m):
    return ((x + m - 1) // m) * m


def _feature_transform_kernel(x_ref, w_ref, h_ref):
    # H tile = X tile @ W  (bf16 x bf16 -> f32 accumulate on the MXU)
    h_ref[...] = jnp.dot(
        x_ref[...], w_ref[...], preferred_element_type=jnp.float32
    ).astype(h_ref.dtype)


def _aggregate_relu_kernel(a_ref, h_ref, o_ref, acc_ref):
    # out tile = relu( sum_k  A[i, k] @ H[k, :] ), accumulated in f32 VMEM.
    k = pl.program_id(1)

    @pl.when(k == 0)
    def _():
        acc_ref[...] = jnp.zeros_like(acc_ref)

    acc_ref[...] += jnp.dot(
        a_ref[...], h_ref[...], preferred_element_type=jnp.float32
    )

    @pl.when(k == pl.num_programs(1) - 1)
    def _():
        o_ref[...] = jnp.maximum(acc_ref[...], 0.0).astype(o_ref.dtype)


def graph_conv_sparse(inputs, adj, weight, *, tile_m=256, tile_k=256):
    """Fused GCN layer: relu(adj @ (inputs @ weight)) with TPU-friendly tiling."""
    n, d_in = inputs.shape
    d_out = weight.shape[1]
    assert adj.shape == (n, n)

    # Lane-dense output: pad D_out up to a multiple of 128.
    d_out_p = max(128, _round_up(d_out, 128))

    # Clamp tiles so tiny graphs don't over-pad; keep them multiples of 128.
    tile_m = min(tile_m, _round_up(n, 128))
    tile_k = min(tile_k, _round_up(n, 128))
    n_p = _round_up(n, int(np.lcm(tile_m, tile_k)))

    bf16 = jnp.bfloat16
    x_p = jnp.zeros((n_p, d_in), bf16).at[:n, :].set(inputs.astype(bf16))
    a_p = jnp.zeros((n_p, n_p), bf16).at[:n, :n].set(adj.astype(bf16))
    w_p = jnp.zeros((d_in, d_out_p), bf16).at[:, :d_out].set(weight.astype(bf16))

    vmem_limit = 64 * 1024 * 1024

    # ---------------- Stage 1: H = X @ W  (computed exactly once) ------------
    h = pl.pallas_call(
        _feature_transform_kernel,
        out_shape=jax.ShapeDtypeStruct((n_p, d_out_p), bf16),
        grid_spec=pltpu.PrefetchScalarGridSpec(
            num_scalar_prefetch=0,
            grid=(n_p // tile_m,),
            in_specs=[
                pl.BlockSpec((tile_m, d_in), lambda i: (i, 0)),
                pl.BlockSpec((d_in, d_out_p), lambda i: (0, 0)),
            ],
            out_specs=pl.BlockSpec((tile_m, d_out_p), lambda i: (i, 0)),
        ),
        compiler_params=pltpu.CompilerParams(
            dimension_semantics=("parallel",),
            vmem_limit_bytes=vmem_limit,
        ),
        cost_estimate=pl.CostEstimate(
            flops=2 * n_p * d_in * d_out_p,
            transcendentals=0,
            bytes_accessed=2 * (n_p * d_in + d_in * d_out_p + n_p * d_out_p),
        ),
    )(x_p, w_p)

    # --------- Stage 2: out = relu(A @ H), K-tiled with f32 accumulator ------
    out_p = pl.pallas_call(
        _aggregate_relu_kernel,
        out_shape=jax.ShapeDtypeStruct((n_p, d_out_p), jnp.float32),
        grid_spec=pltpu.PrefetchScalarGridSpec(
            num_scalar_prefetch=0,
            grid=(n_p // tile_m, n_p // tile_k),
            in_specs=[
                # adjacency tile: (tile_m, tile_k)
                pl.BlockSpec((tile_m, tile_k), lambda i, k: (i, k)),
                # transformed-feature tile: (tile_k, D_out_p)
                pl.BlockSpec((tile_k, d_out_p), lambda i, k: (k, 0)),
            ],
            out_specs=pl.BlockSpec((tile_m, d_out_p), lambda i, k: (i, 0)),
            scratch_shapes=[pltpu.VMEM((tile_m, d_out_p), jnp.float32)],
        ),
        compiler_params=pltpu.CompilerParams(
            dimension_semantics=("parallel", "arbitrary"),
            vmem_limit_bytes=vmem_limit,
        ),
        cost_estimate=pl.CostEstimate(
            flops=2 * n_p * n_p * d_out_p,
            transcendentals=0,
            bytes_accessed=2 * (n_p * n_p + n_p * d_out_p) + 4 * n_p * d_out_p,
        ),
    )(a_p, h)

    # Strip the row / lane padding.
    return out_p[:n, :d_out]


def glorot_init(key, input_dim, output_dim):
    """Deterministic glorot-uniform init matching the PyTorch helper."""
    init_range = np.sqrt(6.0 / (input_dim + output_dim))
    return jax.random.uniform(
        key, (input_dim, output_dim), dtype=jnp.float32,
        minval=-init_range, maxval=init_range,
    )


if __name__ == "__main__":
    # Small shapes consistent with the module: N nodes, D_in -> D_out features.
    N, D_IN, D_OUT = 128, 64, 32

    key = jax.random.PRNGKey(0)
    k_x, k_adj, k_w = jax.random.split(key, 3)

    x = jax.random.normal(k_x, (N, D_IN), dtype=jnp.float32)

    # Symmetric, row-normalized dense adjacency (typical GCN preprocessing).
    a = (jax.random.uniform(k_adj, (N, N)) > 0.9).astype(jnp.float32)
    a = a + a.T + jnp.eye(N, dtype=jnp.float32)
    a = jnp.minimum(a, 1.0)
    a = a / jnp.sum(a, axis=1, keepdims=True)

    w = glorot_init(k_w, D_IN, D_OUT)

    out = graph_conv_sparse(x, a, w)
    out = jax.block_until_ready(out)

    # Reference in plain JAX, mimicking the bf16 operand casting the kernel
    # uses (f32 accumulation), so tolerances stay tight.
    xb = x.astype(jnp.bfloat16).astype(jnp.float32)
    wb = w.astype(jnp.bfloat16).astype(jnp.float32)
    ab = a.astype(jnp.bfloat16).astype(jnp.float32)
    h_ref = (xb @ wb).astype(jnp.bfloat16).astype(jnp.float32)
    ref = jax.nn.relu(ab @ h_ref)

    np.testing.assert_allclose(np.asarray(out), np.asarray(ref),
                               rtol=3e-2, atol=3e-2)

    print("KERNEL_OK")
</pallas_src>

<mosaic_0001>
module attributes {stable_mosaic.version = 11 : i64} {
  func.func @_feature_transform_kernel(%arg0: i32, %arg1: memref<128x64xbf16, #tpu.memory_space<vmem>>, %arg2: memref<64x128xbf16, #tpu.memory_space<vmem>>, %arg3: memref<128x128xbf16, #tpu.memory_space<vmem>>) attributes {dimension_semantics = [#tpu.dimension_semantics<parallel>], iteration_bounds = array<i64: 1>, scalar_prefetch = 0 : i64, scratch_operands = 0 : i64, tpu.core_type = #tpu.core_type<tc>, window_params = [{transform_indices = @transform_0, window_bounds = array<i64: 128, 64>}, {pipeline_mode = #tpu.pipeline_mode<synchronous>, transform_indices = @transform_1, window_bounds = array<i64: 64, 128>}, {transform_indices = @transform_2, window_bounds = array<i64: 128, 128>}]} {
    %c0 = arith.constant 0 : index
    %c0_0 = arith.constant 0 : index
    %0 = vector.load %arg1[%c0, %c0_0] : memref<128x64xbf16, #tpu.memory_space<vmem>>, vector<128x64xbf16>
    %c0_1 = arith.constant 0 : index
    %c0_2 = arith.constant 0 : index
    %1 = vector.load %arg2[%c0_1, %c0_2] : memref<64x128xbf16, #tpu.memory_space<vmem>>, vector<64x128xbf16>
    %cst = arith.constant dense<0.000000e+00> : vector<128x128xf32>
    %2 = tpu.matmul %0, %1, %cst {dimension_numbers = #tpu.dot_dimension_numbers<[1], [0], [0], [1], [0, 0, 1, 1], [], []>} : vector<128x64xbf16>, vector<64x128xbf16>, vector<128x128xf32> -> vector<128x128xf32>
    %3 = arith.truncf %2 : vector<128x128xf32> to vector<128x128xbf16>
    %c0_3 = arith.constant 0 : index
    %c0_4 = arith.constant 0 : index
    %4 = vector.load %arg3[%c0_3, %c0_4] : memref<128x128xbf16, #tpu.memory_space<vmem>>, vector<128x128xbf16>
    tpu.vector_store %arg3[%c0_3, %c0_4], %3 {strides = array<i32>} : memref<128x128xbf16, #tpu.memory_space<vmem>>, vector<128x128xbf16>,
    return
  }
  func.func @transform_0(%arg0: i32) -> (i32, i32) {
    %c0_i32 = arith.constant 0 : i32
    %c0_i32_0 = arith.constant 0 : i32
    return %arg0, %c0_i32 : i32, i32
  }
  func.func @transform_1(%arg0: i32) -> (i32, i32) {
    %c0_i32 = arith.constant 0 : i32
    %c0_i32_0 = arith.constant 0 : i32
    %c0_i32_1 = arith.constant 0 : i32
    return %c0_i32, %c0_i32_0 : i32, i32
  }
  func.func @transform_2(%arg0: i32) -> (i32, i32) {
    %c0_i32 = arith.constant 0 : i32
    %c0_i32_0 = arith.constant 0 : i32
    return %arg0, %c0_i32 : i32, i32
  }
}

</mosaic_0001>

<llo_original>
// kernel: tpu_custom_call.1
$region0: #{tpu_custom_call.1}
  #allocation0 [shape = 'u32[]', space=smem, size = 0x4, offset = 0x4, fixed_abs, tag = 'smem constant byte address 0x4 - core index']
  #allocation1 [shape = 'u32[72,128]{1,0:T(1,128)}', space=vmem, size = 0x9000, scoped, tag = 'internal scratch']
  %s0 = inlined_call_operand.vmem [shape: bf16[128,64], index: 0, kind: input, shape index: {}]
  %s1 = inlined_call_operand.vmem [shape: bf16[64,128], index: 1, kind: input, shape index: {}]
  %s2 = inlined_call_operand.hbm [shape: bf16[128,128], index: 2, kind: output, shape index: {}]
  %s3 = sld [smem:[#allocation0]]
  $region18: #{tpu_custom_call.1} parent=0
    _
  %s5 = ssub.s32 1, %s3
  %s6 = scalar_select 0, %s5, %s3
  $region1: #{tpu_custom_call.1} parent=0
    #allocation2 [shape = 'u8[32768]{0}', space=vmem, size = 0x8000, scoped, tag = 'output window, operand 0, single buffered']
    #allocation3 [shape = 's32[1]{0}', space=sflag, size = 0x4, scoped, tag = 'scoped memory for tpu_custom_call.1']
    %7 = vsyncpa [#allocation3], 0
    // Predicated region
    $region2: #{tpu_custom_call.1} parent=1 // pred_check
      _
    $region3: #{tpu_custom_call.1} parent=1 // pred_check_branch
      %9 = sbr.rel (0) target = $region5
    $region4: #{tpu_custom_call.1} parent=1 // pred_region
      _
    $region5: #{tpu_custom_call.1} parent=1 // pred_fallthru
      _
    // Predicated region
    $region6: #{tpu_custom_call.1} parent=1 // pred_check
      _
    $region7: #{tpu_custom_call.1} parent=1 // pred_check_branch
      %11 = sbr.rel (0) target = $region9
    $region8: #{tpu_custom_call.1} parent=1 // pred_region
      _
    $region9: #{tpu_custom_call.1} parent=1 // pred_fallthru
      _
    %v13 = vld [vmem:[%s0] sm:$0xf]
    %v14 = vld [vmem:[%s0 + $0x4] sm:$0xf]
    %v15 = vld [vmem:[%s0 + $0x8] sm:$0xf]
    %v16 = vld [vmem:[%s0 + $0xc] sm:$0xf]
    %v17 = vld [vmem:[%s0 + $0x10] sm:$0xf]
    %v18 = vld [vmem:[%s0 + $0x14] sm:$0xf]
    %v19 = vld [vmem:[%s0 + $0x18] sm:$0xf]
    %v20 = vld [vmem:[%s0 + $0x1c] sm:$0xf]
    %v21 = vld [vmem:[%s0 + $0x20] sm:$0xf]
    %v22 = vld [vmem:[%s0 + $0x24] sm:$0xf]
    %v23 = vld [vmem:[%s0 + $0x28] sm:$0xf]
    %v24 = vld [vmem:[%s0 + $0x2c] sm:$0xf]
    %v25 = vld [vmem:[%s0 + $0x30] sm:$0xf]
    %v26 = vld [vmem:[%s0 + $0x34] sm:$0xf]
    %v27 = vld [vmem:[%s0 + $0x38] sm:$0xf]
    %v28 = vld [vmem:[%s0 + $0x3c] sm:$0xf]
    %v29 = vld [vmem:[%s1] sm:$0xf]
    %v30 = vld [vmem:[%s1 + $0x4] sm:$0xf]
    %v31 = vld [vmem:[%s1 + $0x8] sm:$0xf]
    %v32 = vld [vmem:[%s1 + $0xc] sm:$0xf]
    %v33 = vld [vmem:[%s1 + $0x10] sm:$0xf]
    %v34 = vld [vmem:[%s1 + $0x14] sm:$0xf]
    %v35 = vld [vmem:[%s1 + $0x18] sm:$0xf]
    %v36 = vld [vmem:[%s1 + $0x1c] sm:$0xf]
    %v53 = vunpack.c.l.b16 %v13
    %v54 = vunpack.c.l.b16 %v14
    %v55 = vunpack.c.l.b16 %v15
    %v56 = vunpack.c.l.b16 %v16
    %v57 = vunpack.c.l.b16 %v17
    %v58 = vunpack.c.l.b16 %v18
    %v59 = vunpack.c.l.b16 %v19
    %v60 = vunpack.c.l.b16 %v20
    %v61 = vunpack.c.l.b16 %v21
    %v62 = vunpack.c.l.b16 %v22
    %v63 = vunpack.c.l.b16 %v23
    %v64 = vunpack.c.l.b16 %v24
    %v65 = vunpack.c.l.b16 %v25
    %v66 = vunpack.c.l.b16 %v26
    %v67 = vunpack.c.l.b16 %v27
    %v68 = vunpack.c.l.b16 %v28
    %v69 = vpack.c.b16 %v54, %v53
    %v70 = vpack.c.b16 %v56, %v55
    %v71 = vpack.c.b16 %v58, %v57
    %v72 = vpack.c.b16 %v60, %v59
    %v73 = vpack.c.b16 %v62, %v61
    %v74 = vpack.c.b16 %v64, %v63
    %v75 = vpack.c.b16 %v66, %v65
    %v76 = vpack.c.b16 %v68, %v67
    %v85 = vunpack.c.l.b16 %v29
    %v86 = vunpack.c.l.b16 %v30
    %v87 = vunpack.c.l.b16 %v31
    %v88 = vunpack.c.l.b16 %v32
    %v89 = vunpack.c.l.b16 %v33
    %v90 = vunpack.c.l.b16 %v34
    %v91 = vunpack.c.l.b16 %v35
    %v92 = vunpack.c.l.b16 %v36
    %v93 = vpack.c.b16 %v86, %v85
    %v94 = vpack.c.b16 %v88, %v87
    %v95 = vpack.c.b16 %v90, %v89
    %v96 = vpack.c.b16 %v92, %v91
    %vm101 = vcmask 523264
    %v103 = vsel %vm101, %v69, 0
    %v106 = vsel %vm101, %v70, 0
    %v109 = vsel %vm101, %v71, 0
    %v112 = vsel %vm101, %v72, 0
    %v115 = vsel %vm101, %v73, 0
    %v118 = vsel %vm101, %v74, 0
    %v121 = vsel %vm101, %v75, 0
    %v124 = vsel %vm101, %v76, 0
    %126 = vmatpush.bf16.msra.mxu0 0
    %127 = vmatpush.bf16.msra.mxu0 0
    %128 = vmatpush.bf16.msra.mxu0 0
    %129 = vmatpush.bf16.msra.mxu0 0
    %130 = vmatpush.bf16.msra.mxu0 %v96
    %131 = vmatpush.bf16.msra.mxu0 %v95
    %132 = vmatpush.bf16.msra.mxu0 %v94
    %133 = vmatpush.bf16.msra.mxu0 %v93
    %134 = vmatmul.bf16.gmra.mxu0 %v103
    %v135 = vpop.f32.mrf.mxu0
    %v136 = vadd.f32 0.0, %v135
    %v137 = vpop.f32.mrf.mxu0
    %v138 = vadd.f32 0.0, %v137
    %139 = vmatmul.bf16.gmra.mxu0 %v106
    %v140 = vpop.f32.mrf.mxu0
    %v141 = vadd.f32 0.0, %v140
    %v142 = vpop.f32.mrf.mxu0
    %v143 = vadd.f32 0.0, %v142
    %144 = vmatmul.bf16.gmra.mxu0 %v109
    %v145 = vpop.f32.mrf.mxu0
    %v146 = vadd.f32 0.0, %v145
    %v147 = vpop.f32.mrf.mxu0
    %v148 = vadd.f32 0.0, %v147
    %149 = vmatmul.bf16.gmra.mxu0 %v112
    %v150 = vpop.f32.mrf.mxu0
    %v151 = vadd.f32 0.0, %v150
    %v152 = vpop.f32.mrf.mxu0
    %v153 = vadd.f32 0.0, %v152
    %154 = vmatmul.bf16.gmra.mxu0 %v115
    %v155 = vpop.f32.mrf.mxu0
    %v156 = vadd.f32 0.0, %v155
    %v157 = vpop.f32.mrf.mxu0
    %v158 = vadd.f32 0.0, %v157
    %159 = vmatmul.bf16.gmra.mxu0 %v118
    %v160 = vpop.f32.mrf.mxu0
    %v161 = vadd.f32 0.0, %v160
    %v162 = vpop.f32.mrf.mxu0
    %v163 = vadd.f32 0.0, %v162
    %164 = vmatmul.bf16.gmra.mxu0 %v121
    %v165 = vpop.f32.mrf.mxu0
    %v166 = vadd.f32 0.0, %v165
    %v167 = vpop.f32.mrf.mxu0
    %v168 = vadd.f32 0.0, %v167
    %169 = vmatmul.bf16.gmra.mxu0 %v124
    %v170 = vpop.f32.mrf.mxu0
    %v171 = vadd.f32 0.0, %v170
    %v172 = vpop.f32.mrf.mxu0
    %v173 = vadd.f32 0.0, %v172
    %174 = vdwg.mxu0
    %v175 = vpack.c.bf16 %v136, %v136
    %v176 = vpack.c.bf16 %v138, %v138
    %v177 = vpack.c.bf16 %v141, %v141
    %v178 = vpack.c.bf16 %v143, %v143
    %v179 = vpack.c.bf16 %v146, %v146
    %v180 = vpack.c.bf16 %v148, %v148
    %v181 = vpack.c.bf16 %v151, %v151
    %v182 = vpack.c.bf16 %v153, %v153
    %v183 = vpack.c.bf16 %v156, %v156
    %v184 = vpack.c.bf16 %v158, %v158
    %v185 = vpack.c.bf16 %v161, %v161
    %v186 = vpack.c.bf16 %v163, %v163
    %v187 = vpack.c.bf16 %v166, %v166
    %v188 = vpack.c.bf16 %v168, %v168
    %v189 = vpack.c.bf16 %v171, %v171
    %v190 = vpack.c.bf16 %v173, %v173
    %191 = vst [vmem:[#allocation2] sm:$0xf] %v175
    %192 = vst [vmem:[#allocation2 + $0x4] sm:$0xf] %v176
    %193 = vst [vmem:[#allocation2 + $0x8] sm:$0xf] %v177
    %194 = vst [vmem:[#allocation2 + $0xc] sm:$0xf] %v178
    %195 = vst [vmem:[#allocation2 + $0x10] sm:$0xf] %v179
    %196 = vst [vmem:[#allocation2 + $0x14] sm:$0xf] %v180
    %197 = vst [vmem:[#allocation2 + $0x18] sm:$0xf] %v181
    %198 = vst [vmem:[#allocation2 + $0x1c] sm:$0xf] %v182
    %199 = vst [vmem:[#allocation2 + $0x20] sm:$0xf] %v183
    %200 = vst [vmem:[#allocation2 + $0x24] sm:$0xf] %v184
    %201 = vst [vmem:[#allocation2 + $0x28] sm:$0xf] %v185
    %202 = vst [vmem:[#allocation2 + $0x2c] sm:$0xf] %v186
    %203 = vst [vmem:[#allocation2 + $0x30] sm:$0xf] %v187
    %204 = vst [vmem:[#allocation2 + $0x34] sm:$0xf] %v188
    %205 = vst [vmem:[#allocation2 + $0x38] sm:$0xf] %v189
    %206 = vst [vmem:[#allocation2 + $0x3c] sm:$0xf] %v190
    // Predicated region
    $region10: #{tpu_custom_call.1} parent=1 // pred_check
      _
    $region11: #{tpu_custom_call.1} parent=1 // pred_check_branch
      %208 = sbr.rel (0) target = $region13
    $region12: #{tpu_custom_call.1} parent=1 // pred_region
      %210 = vsyncadd [#allocation3], 0
      %s211 = sshll.u32 [#allocation2], 4
      %s212 = int_to_ptr.vmem [resolvable:$true] %s211
      %s213 = sshll.u32 %s2, 4
      %s214 = int_to_ptr.hbm [resolvable:$true] %s213
      %219 = dma.vmem_to_hbm [thread:$0]  %s212, 1024, %s214, [#allocation3], 64, 64, 4
    $region13: #{tpu_custom_call.1} parent=1 // pred_fallthru
      _
    // Predicated region
    $region14: #{tpu_custom_call.1} parent=1 // pred_check
      _
    $region15: #{tpu_custom_call.1} parent=1 // pred_check_branch
      %221 = sbr.rel (0) target = $region17
    $region16: #{tpu_custom_call.1} parent=1 // pred_region
      %223 = dma.done [#allocation3], 1024
    $region17: #{tpu_custom_call.1} parent=1 // pred_fallthru
      _
    %224 = vsyncpa [#allocation3], 1

</llo_original>
